<compile_context>
chip_gen: v6e
topology: v6e:2x2x1
jax: 0.10.0
libtpu: 0.0.40
codegen_flags: <defaults>
</compile_context>

<pallas_src>
import functools

import jax
import jax.numpy as jnp
from jax.experimental import pallas as pl
from jax.experimental.pallas import tpu as pltpu


# ---------------------------------------------------------------------------
# Shared excitation gate: z = sigmoid(relu(y @ W^T + b)).
# w_t is the 1x1-conv weight ALREADY transposed to (C_in, C_out) in the
# wrapper; y is the pooled mean, (TB, C) float32.
# ---------------------------------------------------------------------------
def _gate(y, w_t, b):
    tb, c = y.shape
    if tb * c * c <= 64 * 1024:
        # Tiny gate: VPU broadcast-multiply + reduce (<= 64 vregs, no spill,
        # no MXU matvec for small C). Mixed dtypes auto-promote to f32.
        z = jnp.sum(y[:, :, None] * w_t[None, :, :], axis=1)            # (TB, C)
    else:
        # Larger gate: the MXU is idle in this mem-bound kernel, so the small
        # matmul is essentially free. Contract dim 1 of y with dim 0 of w_t
        # (no in-kernel transpose); accumulate in f32.
        y_mm = y if w_t.dtype == jnp.float32 else y.astype(w_t.dtype)
        z = jax.lax.dot_general(
            y_mm, w_t,
            dimension_numbers=(((1,), (0,)), ((), ())),
            preferred_element_type=jnp.float32)                         # (TB, C)
    z = z.astype(jnp.float32) + b
    return jax.nn.sigmoid(jnp.maximum(z, 0.0))                          # (TB, C) f32


# ---------------------------------------------------------------------------
# Single-pass kernel: whole (C, HW) slab(s) resident in VMEM per grid step.
# ---------------------------------------------------------------------------
def _ese_kernel(x_ref, w_ref, b_ref, o_ref, *, inv_hw):
    # x_ref: (TB, C, HW)   w_ref: (C_in, C_out)   b_ref: (1, C)   o_ref: like x
    # Squeeze: global average pool; accumulate the sum in f32, true 1/HW.
    y = jnp.sum(x_ref[...].astype(jnp.float32), axis=-1) * inv_hw       # (TB, C)
    # Excitation.
    z = _gate(y, w_ref[...], b_ref[...]).astype(o_ref.dtype)            # (TB, C)
    # Scale: re-read the block from VMEM and broadcast the gate over HW.
    o_ref[...] = (x_ref[...] * z[:, :, None]).astype(o_ref.dtype)


# ---------------------------------------------------------------------------
# Two-pass fallback (v7x / very large C*HW layers).
# Pass A: HW-tiled pooled sum (reduction grid axis) + excitation at finalize.
# Pass B: HW-tiled scale.
# ---------------------------------------------------------------------------
def _pool_gate_kernel(x_ref, w_ref, b_ref, z_ref, acc_ref, *, hw, inv_hw):
    # x_ref: (1, C, THW)  z_ref: (1, 1, C) f32  acc_ref: (1, C) f32 scratch
    k = pl.program_id(1)

    @pl.when(k == 0)
    def _init():
        acc_ref[...] = jnp.zeros_like(acc_ref)

    thw = x_ref.shape[-1]
    xs = x_ref[...].astype(jnp.float32)
    if hw % thw != 0:
        # Ragged tail: mask the lanes that fall past HW (their contents are
        # undefined for the partially out-of-bounds last block).
        lane = jax.lax.broadcasted_iota(jnp.int32, x_ref.shape, 2)
        xs = jnp.where(k * thw + lane < hw, xs, 0.0)
    acc_ref[...] += jnp.sum(xs, axis=-1)

    @pl.when(k == pl.num_programs(1) - 1)
    def _finalize():
        y = acc_ref[...] * inv_hw                                       # (1, C)
        z_ref[...] = _gate(y, w_ref[...], b_ref[...])[:, None, :]       # (1,1,C)


def _scale_kernel(x_ref, z_ref, o_ref):
    # x_ref/o_ref: (1, C, THW)   z_ref: (1, C, 1) f32
    z = z_ref[...].astype(o_ref.dtype)
    o_ref[...] = (x_ref[...] * z).astype(o_ref.dtype)


# ---------------------------------------------------------------------------
# Generation-aware VMEM / tiling helpers.
# ---------------------------------------------------------------------------
def _usable_vmem_bytes():
    """~85% of per-TensorCore VMEM: ~54 MiB on v7x, ~108 MiB on v6e/v5e."""
    cap = None
    try:
        info = pltpu.get_tpu_info()
        for name in ("vmem_capacity_bytes", "vmem_size_bytes", "vmem_bytes"):
            v = getattr(info, name, None)
            if v:
                cap = int(v)
                break
    except Exception:
        cap = None
    if cap is None:
        try:
            kind = jax.devices()[0].device_kind.lower()
        except Exception:
            kind = ""
        if "v7" in kind or "7x" in kind:
            cap = 64 << 20            # v7x: 64 MiB per TensorCore
        elif "v6" in kind or "v5" in kind:
            cap = 128 << 20           # v6e / v5e / v5p: 128 MiB
        else:
            cap = 64 << 20            # unknown: be conservative
    return int(cap * 0.85)


def _choose_batch_tile(B, slab_bytes, data_budget_bytes, *, target_step_bytes=6 << 20):
    """TB (batch elems per grid step): large DMAs, fits the budget for the 4
    double-buffered in/out blocks, and (when B allows) leaves >= 4 grid steps
    so both TensorCores of a megacore part get >= 2 pipelined steps each."""
    max_tb = max(1, int(data_budget_bytes) // (4 * slab_bytes))
    divisors = [d for d in range(1, B + 1) if B % d == 0 and d <= max_tb] or [1]
    for min_steps in (4, 2, 1):
        cand = [d for d in divisors if B // d >= min_steps]
        if not cand:
            continue
        for d in cand:                       # smallest TB meeting the DMA target
            if d * slab_bytes >= target_step_bytes:
                return d
        if min_steps > 1:
            return cand[-1]                  # biggest TB that keeps min_steps
    return divisors[-1]


def _choose_hw_tile(C, HW, itemsize, data_budget_bytes):
    """Largest multiple-of-128 HW chunk whose 4 double-buffered (1, C, THW)
    in/out blocks fit the budget."""
    per_chunk = 4 * C * 128 * itemsize
    chunks = max(1, int(data_budget_bytes) // per_chunk)
    chunks = min(chunks, pl.cdiv(HW, 128))
    return int(chunks) * 128


# ---------------------------------------------------------------------------
# Wrappers.
# ---------------------------------------------------------------------------
def _ese_two_pass(x_flat, w_t, bias2d, data_budget, usable_vmem):
    B, C, HW = x_flat.shape
    itemsize = jnp.dtype(x_flat.dtype).itemsize
    w_bytes = C * C * jnp.dtype(w_t.dtype).itemsize
    thw = _choose_hw_tile(C, HW, itemsize, data_budget)
    n_hw = pl.cdiv(HW, thw)
    vmem_limit = int(min(usable_vmem,
                         max(4 * C * thw * itemsize + 2 * w_bytes + (4 << 20),
                             16 << 20)))

    # Pass A: pooled mean over HW tiles (reduction axis last) + gate at finalize.
    z = pl.pallas_call(
        functools.partial(_pool_gate_kernel, hw=HW, inv_hw=1.0 / HW),
        out_shape=jax.ShapeDtypeStruct((B, 1, C), jnp.float32),
        grid_spec=pltpu.PrefetchScalarGridSpec(
            num_scalar_prefetch=0,
            grid=(B, n_hw),
            in_specs=[
                pl.BlockSpec((1, C, thw), lambda b, k: (b, 0, k)),
                pl.BlockSpec((C, C), lambda b, k: (0, 0)),
                pl.BlockSpec((1, C), lambda b, k: (0, 0)),
            ],
            out_specs=pl.BlockSpec((1, 1, C), lambda b, k: (b, 0, 0)),
            scratch_shapes=[pltpu.VMEM((1, C), jnp.float32)],
        ),
        compiler_params=pltpu.CompilerParams(
            dimension_semantics=("parallel", "arbitrary"),
            vmem_limit_bytes=vmem_limit),
        cost_estimate=pl.CostEstimate(
            flops=B * C * HW + 2 * B * C * C,
            transcendentals=B * C,
            bytes_accessed=B * C * HW * itemsize + w_bytes + 4 * C),
    )(x_flat, w_t, bias2d)

    # Tiny relayout (B, 1, C) -> (B, C, 1) in the wrapper so pass B broadcasts
    # along the lane axis with no in-kernel transpose.
    z_t = jnp.transpose(z, (0, 2, 1))

    # Pass B: HW-tiled scale.
    out_flat = pl.pallas_call(
        _scale_kernel,
        out_shape=jax.ShapeDtypeStruct((B, C, HW), x_flat.dtype),
        grid_spec=pltpu.PrefetchScalarGridSpec(
            num_scalar_prefetch=0,
            grid=(B, n_hw),
            in_specs=[
                pl.BlockSpec((1, C, thw), lambda b, k: (b, 0, k)),
                pl.BlockSpec((1, C, 1), lambda b, k: (b, 0, 0)),
            ],
            out_specs=pl.BlockSpec((1, C, thw), lambda b, k: (b, 0, k)),
        ),
        compiler_params=pltpu.CompilerParams(
            dimension_semantics=("parallel", "parallel"),
            vmem_limit_bytes=vmem_limit),
        cost_estimate=pl.CostEstimate(
            flops=B * C * HW,
            transcendentals=0,
            bytes_accessed=2 * B * C * HW * itemsize + B * C * 4),
    )(x_flat, z_t)
    return out_flat


def ese_module(x, weight, bias, *, force_two_pass=False):
    """x: (B, C, H, W); weight: (C, C) = 1x1-conv (out_ch, in_ch); bias: (C,)."""
    B, C, H, W = x.shape
    HW = H * W

    x_flat = x.reshape(B, C, HW)                 # contiguous merge: free reshape
    w_t = jnp.transpose(weight)                  # (C_in, C_out), once, own dtype
    bias2d = bias.reshape(1, C).astype(jnp.float32)

    itemsize = jnp.dtype(x.dtype).itemsize
    w_bytes = C * C * jnp.dtype(weight.dtype).itemsize
    slab = C * HW * itemsize                     # one batch element's block

    usable = _usable_vmem_bytes()
    # Budget for the 4 double-buffered x / out blocks; leave room for the
    # double-buffered weight + bias tiles and Mosaic-internal scratch.
    data_budget = usable - 2 * w_bytes - 2 * 4 * C - (4 << 20)

    if force_two_pass or data_budget < 4 * slab:
        # Even a single-batch block does not fit (e.g. v7x 64 MiB VMEM with
        # large C*HW): two-pass HW-tiled path (1.5x HBM traffic, pipelined).
        out_flat = _ese_two_pass(x_flat, w_t, bias2d,
                                 max(data_budget, 8 << 20), usable)
        return out_flat.reshape(B, C, H, W)

    TB = _choose_batch_tile(B, slab, data_budget)
    vmem_limit = int(min(usable,
                         max(4 * TB * slab + 2 * w_bytes + (4 << 20), 16 << 20)))

    out_flat = pl.pallas_call(
        functools.partial(_ese_kernel, inv_hw=1.0 / HW),
        out_shape=jax.ShapeDtypeStruct((B, C, HW), x.dtype),
        grid_spec=pltpu.PrefetchScalarGridSpec(
            num_scalar_prefetch=0,
            grid=(B // TB,),
            in_specs=[
                pl.BlockSpec((TB, C, HW), lambda g: (g, 0, 0)),
                pl.BlockSpec((C, C), lambda g: (0, 0)),
                pl.BlockSpec((1, C), lambda g: (0, 0)),
            ],
            out_specs=pl.BlockSpec((TB, C, HW), lambda g: (g, 0, 0)),
        ),
        compiler_params=pltpu.CompilerParams(
            dimension_semantics=("parallel",),
            vmem_limit_bytes=vmem_limit,
        ),
        cost_estimate=pl.CostEstimate(
            flops=3 * B * C * HW + 2 * B * C * C,
            transcendentals=B * C,
            bytes_accessed=2 * B * C * HW * itemsize + w_bytes + 4 * C,
        ),
    )(x_flat, w_t, bias2d)

    return out_flat.reshape(B, C, H, W)


def _reference(x, weight, bias):
    # Pure-JAX reference of the PyTorch forward (ReLU then Sigmoid, per spec).
    y = jnp.mean(x, axis=(2, 3))                                        # (B, C)
    z = y @ weight.T + bias                                             # (B, C)
    z = jax.nn.sigmoid(jnp.maximum(z, 0.0))
    return x * z[:, :, None, None]


if __name__ == "__main__":
    key = jax.random.PRNGKey(0)
    kx, kw, kb = jax.random.split(key, 3)

    B, C, H, W = 2, 4, 16, 16
    x = jax.random.normal(kx, (B, C, H, W), dtype=jnp.float32)
    # Deterministic synthetic parameters for the 1x1 conv (channel -> channel).
    weight = jax.random.normal(kw, (C, C), dtype=jnp.float32) * 0.1
    bias = jax.random.normal(kb, (C,), dtype=jnp.float32) * 0.1

    ref = _reference(x, weight, bias)

    # Main (single-pass) path.
    out = ese_module(x, weight, bias)
    jax.block_until_ready(out)
    assert jnp.allclose(out, ref, atol=1e-5, rtol=1e-5), "single-pass mismatch"

    # Exercise the two-pass large-layer fallback path at the small shape too.
    out2 = ese_module(x, weight, bias, force_two_pass=True)
    jax.block_until_ready(out2)
    assert jnp.allclose(out2, ref, atol=1e-5, rtol=1e-5), "two-pass mismatch"

    print("KERNEL_OK")
</pallas_src>

<mosaic_0001>
module attributes {stable_mosaic.version = 11 : i64} {
  func.func @_ese_kernel(%arg0: i32, %arg1: memref<1x4x256xf32, #tpu.memory_space<vmem>>, %arg2: memref<4x4xf32, #tpu.memory_space<vmem>>, %arg3: memref<1x4xf32, #tpu.memory_space<vmem>>, %arg4: memref<1x4x256xf32, #tpu.memory_space<vmem>>) attributes {dimension_semantics = [#tpu.dimension_semantics<parallel>], iteration_bounds = array<i64: 2>, scalar_prefetch = 0 : i64, scratch_operands = 0 : i64, tpu.core_type = #tpu.core_type<tc>, window_params = [{transform_indices = @transform_0, window_bounds = array<i64: 1, 4, 256>}, {pipeline_mode = #tpu.pipeline_mode<synchronous>, transform_indices = @transform_1, window_bounds = array<i64: 4, 4>}, {pipeline_mode = #tpu.pipeline_mode<synchronous>, transform_indices = @transform_2, window_bounds = array<i64: 1, 4>}, {transform_indices = @transform_3, window_bounds = array<i64: 1, 4, 256>}]} {
    %c0 = arith.constant 0 : index
    %c0_0 = arith.constant 0 : index
    %c0_1 = arith.constant 0 : index
    %0 = vector.load %arg1[%c0, %c0_0, %c0_1] : memref<1x4x256xf32, #tpu.memory_space<vmem>>, vector<1x4x256xf32>
    %cst = arith.constant dense<0.000000e+00> : vector<1x4xf32>
    %1 = vector.multi_reduction <add>, %0, %cst [2] : vector<1x4x256xf32> to vector<1x4xf32>
    %cst_2 = arith.constant 3.906250e-03 : f32
    %2 = vector.broadcast %cst_2 : f32 to vector<1x4xf32>
    %3 = arith.mulf %1, %2 : vector<1x4xf32>
    %c0_3 = arith.constant 0 : index
    %c0_4 = arith.constant 0 : index
    %4 = vector.load %arg2[%c0_3, %c0_4] : memref<4x4xf32, #tpu.memory_space<vmem>>, vector<4x4xf32>
    %c0_5 = arith.constant 0 : index
    %c0_6 = arith.constant 0 : index
    %5 = vector.load %arg3[%c0_5, %c0_6] : memref<1x4xf32, #tpu.memory_space<vmem>>, vector<1x4xf32>
    %6 = vector.shape_cast %3 : vector<1x4xf32> to vector<1x4x1xf32>
    %7 = vector.shape_cast %4 : vector<4x4xf32> to vector<1x4x4xf32>
    %8 = vector.broadcast %6 : vector<1x4x1xf32> to vector<1x4x4xf32>
    %9 = arith.mulf %8, %7 : vector<1x4x4xf32>
    %cst_7 = arith.constant dense<0.000000e+00> : vector<1x4xf32>
    %10 = vector.multi_reduction <add>, %9, %cst_7 [1] : vector<1x4x4xf32> to vector<1x4xf32>
    %11 = arith.addf %10, %5 : vector<1x4xf32>
    %cst_8 = arith.constant 0.000000e+00 : f32
    %12 = vector.broadcast %cst_8 : f32 to vector<1x4xf32>
    %13 = arith.maximumf %11, %12 : vector<1x4xf32>
    %14 = arith.negf %13 : vector<1x4xf32>
    %15 = math.exp %14 : vector<1x4xf32>
    %cst_9 = arith.constant 1.000000e+00 : f32
    %16 = vector.broadcast %cst_9 : f32 to vector<1x4xf32>
    %17 = arith.addf %16, %15 : vector<1x4xf32>
    %18 = arith.divf %16, %17 : vector<1x4xf32>
    %c0_10 = arith.constant 0 : index
    %c0_11 = arith.constant 0 : index
    %c0_12 = arith.constant 0 : index
    %19 = vector.load %arg1[%c0_10, %c0_11, %c0_12] : memref<1x4x256xf32, #tpu.memory_space<vmem>>, vector<1x4x256xf32>
    %20 = vector.shape_cast %18 : vector<1x4xf32> to vector<1x4x1xf32>
    %21 = vector.broadcast %20 : vector<1x4x1xf32> to vector<1x4x256xf32>
    %22 = arith.mulf %19, %21 : vector<1x4x256xf32>
    %c0_13 = arith.constant 0 : index
    %c0_14 = arith.constant 0 : index
    %c0_15 = arith.constant 0 : index
    %23 = vector.load %arg4[%c0_13, %c0_14, %c0_15] : memref<1x4x256xf32, #tpu.memory_space<vmem>>, vector<1x4x256xf32>
    tpu.vector_store %arg4[%c0_13, %c0_14, %c0_15], %22 {strides = array<i32>} : memref<1x4x256xf32, #tpu.memory_space<vmem>>, vector<1x4x256xf32>,
    return
  }
  func.func @transform_0(%arg0: i32) -> (i32, i32, i32) {
    %c0_i32 = arith.constant 0 : i32
    %c0_i32_0 = arith.constant 0 : i32
    %c0_i32_1 = arith.constant 0 : i32
    return %arg0, %c0_i32, %c0_i32_0 : i32, i32, i32
  }
  func.func @transform_1(%arg0: i32) -> (i32, i32) {
    %c0_i32 = arith.constant 0 : i32
    %c0_i32_0 = arith.constant 0 : i32
    %c0_i32_1 = arith.constant 0 : i32
    return %c0_i32, %c0_i32_0 : i32, i32
  }
  func.func @transform_2(%arg0: i32) -> (i32, i32) {
    %c0_i32 = arith.constant 0 : i32
    %c0_i32_0 = arith.constant 0 : i32
    %c0_i32_1 = arith.constant 0 : i32
    return %c0_i32, %c0_i32_0 : i32, i32
  }
  func.func @transform_3(%arg0: i32) -> (i32, i32, i32) {
    %c0_i32 = arith.constant 0 : i32
    %c0_i32_0 = arith.constant 0 : i32
    %c0_i32_1 = arith.constant 0 : i32
    return %arg0, %c0_i32, %c0_i32_0 : i32, i32, i32
  }
}

</mosaic_0001>

<llo_original>
// kernel: tpu_custom_call.1
$region0: #{tpu_custom_call.1}
  #allocation0 [shape = 'u32[]', space=smem, size = 0x4, offset = 0x4, fixed_abs, tag = 'smem constant byte address 0x4 - core index']
  #allocation1 [shape = 'u32[144,128]{1,0:T(1,128)}', space=vmem, size = 0x12000, scoped, tag = 'internal scratch']
  %s0 = inlined_call_operand.hbm [shape: f32[2,4,256], index: 0, kind: input, shape index: {}]
  %s1 = inlined_call_operand.hbm [shape: f32[4,4], index: 1, kind: input, shape index: {}]
  %s2 = inlined_call_operand.vmem [shape: f32[1,4], index: 2, kind: input, shape index: {}]
  %s3 = inlined_call_operand.hbm [shape: f32[2,4,256], index: 3, kind: output, shape index: {}]
  %s4 = sld [smem:[#allocation0]]
  $region53: #{tpu_custom_call.1} parent=0
    _
  %s6 = ssub.s32 1, %s4
  %s7 = scalar_select 0, %s6, %s4
  $region1: #{tpu_custom_call.1} parent=0
    #allocation2 [shape = 'u8[8192]{0}', space=vmem, size = 0x2000, scoped, tag = 'input window, operand 0']
    #allocation3 [shape = 's32[2]{0}', space=sflag, size = 0x8, scoped, tag = 'scoped memory for tpu_custom_call.1']
    #allocation4 [shape = 's32[2]{0}', space=sflag, size = 0x8, scoped, tag = 'scoped memory for tpu_custom_call.1']
    #allocation5 [shape = 'u8[2048]{0}', space=vmem, size = 0x800, scoped, tag = 'input window, operand 1, single buffered']
    #allocation6 [shape = 's32[1]{0}', space=sflag, size = 0x4, scoped, tag = 'scoped memory for tpu_custom_call.1']
    #allocation7 [shape = 'u8[8192]{0}', space=vmem, size = 0x2000, scoped, tag = 'output window, operand 0']
    %8 = vsyncpa [#allocation3], 0
    %s9 = scalar_lea.sflag [#allocation3], 1
    %10 = vsyncpa %s9, 0
    %11 = vsyncpa [#allocation6], 0
    %12 = vsyncpa [#allocation4], 0
    %s13 = scalar_lea.sflag [#allocation4], 1
    %14 = vsyncpa %s13, 0
    loop: start=0, step=1, limit=4
    $region2: #{tpu_custom_call.1} parent=1 // loop_pre_header
      _
    $region3: #{tpu_custom_call.1} parent=1 // loop_header
      %s16 = sphi 0, %s20
      %p17 = scmp.ge.s32.totalorder %s16, 4
      %s26 = sphi 0, %s28
      %s29 = sphi 0, %s26
      %s30 = sphi 0, %s29
      %s46 = sphi 0, %s30
      %s50 = sphi 0, %s50
      %s52 = sphi 0, %s50
      %s53 = sphi 0, %s52
      %s67 = sphi 0, %s53
      %s71 = sphi 0, %s71
      %s73 = sphi 0, %s71
      %s74 = sphi 0, %s73
      %s88 = sphi 0, %s74
      %s94 = sphi 0, %s96
      %s97 = sphi 0, %s94
      %s98 = sphi 0, %s97
      %s114 = sphi 0, %s98
    $region4: #{tpu_custom_call.1} parent=1 // loop_header_branch
      %19 = sbr.rel (%p17) target = $region8
    $region5: #{tpu_custom_call.1} parent=1 // loop_body
      %s21 = ssub.s32 %s16, 1
      %s22 = ssub.s32 %s16, 2
      %s23 = sadd.s32 %s16, 1
      %s24 = ssub.s32 %s16, %s23
      %p25 = scmp.eq.s32.totalorder %s24, 0
      %s27 = sadd.s32 %s26, 1
      %s28 = scalar_select %p25, %s26, %s27
      %p31 = pneg %p25
      %p32 = scmp.eq.s32.totalorder %s16, 1
      %p33 = por %p31, %p32
      %p34 = scmp.ne.s32.totalorder %s26, %s29
      %p35 = scmp.eq.s32.totalorder %s16, 0
      %p36 = por %p34, %p35
      %p37 = scmp.ne.s32.totalorder %s26, %s29
      %p38 = scmp.eq.s32.totalorder %s21, 1
      %p39 = por %p37, %p38
      %p40 = scmp.ne.s32.totalorder %s29, %s30
      %p41 = scmp.eq.s32.totalorder %s21, 0
      %p42 = por %p40, %p41
      %p43 = scmp.ne.s32.totalorder %s29, %s30
      %p44 = scmp.eq.s32.totalorder %s22, 1
      %p45 = por %p43, %p44
      %p47 = scmp.ne.s32.totalorder %s30, %s46
      %p48 = scmp.eq.s32.totalorder %s22, 0
      %p49 = por %p47, %p48
      %s51 = sadd.s32 %s50, 1
      %p54 = scmp.eq.s32.totalorder %s16, 1
      %p55 = scmp.ne.s32.totalorder %s50, %s52
      %p56 = scmp.eq.s32.totalorder %s16, 0
      %p57 = por %p55, %p56
      %p58 = scmp.ne.s32.totalorder %s50, %s52
      %p59 = scmp.eq.s32.totalorder %s21, 1
      %p60 = por %p58, %p59
      %p61 = scmp.ne.s32.totalorder %s52, %s53
      %p62 = scmp.eq.s32.totalorder %s21, 0
      %p63 = por %p61, %p62
      %p64 = scmp.ne.s32.totalorder %s52, %s53
      %p65 = scmp.eq.s32.totalorder %s22, 1
      %p66 = por %p64, %p65
      %p68 = scmp.ne.s32.totalorder %s53, %s67
      %p69 = scmp.eq.s32.totalorder %s22, 0
      %p70 = por %p68, %p69
      %s72 = sadd.s32 %s71, 1
      %p75 = scmp.eq.s32.totalorder %s16, 1
      %p76 = scmp.ne.s32.totalorder %s71, %s73
      %p77 = scmp.eq.s32.totalorder %s16, 0
      %p78 = por %p76, %p77
      %p79 = scmp.ne.s32.totalorder %s71, %s73
      %p80 = scmp.eq.s32.totalorder %s21, 1
      %p81 = por %p79, %p80
      %p82 = scmp.ne.s32.totalorder %s73, %s74
      %p83 = scmp.eq.s32.totalorder %s21, 0
      %p84 = por %p82, %p83
      %p85 = scmp.ne.s32.totalorder %s73, %s74
      %p86 = scmp.eq.s32.totalorder %s22, 1
      %p87 = por %p85, %p86
      %p89 = scmp.ne.s32.totalorder %s74, %s88
      %p90 = scmp.eq.s32.totalorder %s22, 0
      %p91 = por %p89, %p90
      %s92 = ssub.s32 %s16, %s23
      %p93 = scmp.eq.s32.totalorder %s92, 0
      %s95 = sadd.s32 %s94, 1
      %s96 = scalar_select %p93, %s94, %s95
      %p99 = pneg %p93
      %p100 = scmp.eq.s32.totalorder %s16, 1
      %p101 = por %p99, %p100
      %p102 = scmp.ne.s32.totalorder %s94, %s97
      %p103 = scmp.eq.s32.totalorder %s16, 0
      %p104 = por %p102, %p103
      %p105 = scmp.ne.s32.totalorder %s94, %s97
      %p106 = scmp.eq.s32.totalorder %s21, 1
      %p107 = por %p105, %p106
      %p108 = scmp.ne.s32.totalorder %s97, %s98
      %p109 = scmp.eq.s32.totalorder %s21, 0
      %p110 = por %p108, %p109
      %p111 = scmp.ne.s32.totalorder %s97, %s98
      %p112 = scmp.eq.s32.totalorder %s22, 1
      %p113 = por %p111, %p112
      %p115 = scmp.ne.s32.totalorder %s98, %s114
      %p116 = scmp.eq.s32.totalorder %s22, 0
      %p117 = por %p115, %p116
      %p118 = scmp.le.s32.totalorder 1, %s16
      %p119 = scmp.lt.s32.totalorder %s16, 3
      %p120 = pnand %p118, %p119
      %p121 = pneg %p120
      // Predicated region
      $region9: #{tpu_custom_call.1} parent=5 // pred_check
        _
      $region10: #{tpu_custom_call.1} parent=5 // pred_check_branch
        %123 = sbr.rel (%p120) target = $region12
      $region11: #{tpu_custom_call.1} parent=5 // pred_region
        %s124 = ssub.s32 %s16, 1
        // Predicated region
        $region13: #{tpu_custom_call.1} parent=11 // pred_check
          %p125 = pneg %p63
        $region14: #{tpu_custom_call.1} parent=11 // pred_check_branch
          %127 = sbr.rel (%p125) target = $region16
        $region15: #{tpu_custom_call.1} parent=11 // pred_region
          %s129 = ssub.s32 64, 64
          %130 = vsyncadd [#allocation6], %s129
          %s132 = sshll.u32 [#allocation5], 4
          %s133 = int_to_ptr.vmem [resolvable:$true] %s132
          %135 = dma.hbm_to_vmem [thread:$0]  %s1, 64, %s133, [#allocation6]
        $region16: #{tpu_custom_call.1} parent=11 // pred_fallthru
          _
        // Predicated region
        $region17: #{tpu_custom_call.1} parent=11 // pred_check
          %p136 = pneg %p84
        $region18: #{tpu_custom_call.1} parent=11 // pred_check_branch
          %138 = sbr.rel (%p136) target = $region20
        $region19: #{tpu_custom_call.1} parent=11 // pred_region
          _
        $region20: #{tpu_custom_call.1} parent=11 // pred_fallthru
          _
      $region12: #{tpu_custom_call.1} parent=5 // pred_fallthru
        _
      %p139 = scmp.lt.s32.totalorder %s16, 2
      // Predicated region
      $region21: #{tpu_custom_call.1} parent=5 // pred_check
        %p140 = pneg %p139
      $region22: #{tpu_custom_call.1} parent=5 // pred_check_branch
        %142 = sbr.rel (%p140) target = $region24
      $region23: #{tpu_custom_call.1} parent=5 // pred_region
        // Predicated region
        $region25: #{tpu_custom_call.1} parent=23 // pred_check
          %p143 = pneg %p36
        $region26: #{tpu_custom_call.1} parent=23 // pred_check_branch
          %145 = sbr.rel (%p143) target = $region28
        $region27: #{tpu_custom_call.1} parent=23 // pred_region
          %s146 = sand.u32 %s26, 1
          %s147 = scalar_lea.sflag [#allocation3], %s146
          %s148 = sand.u32 %s26, 1
          %s149 = smul.addr %s148, 8
          %s150 = scalar_lea.vmem [#allocation2], %s149
          %s152 = ssub.s32 128, 128
          %153 = vsyncadd %s147, %s152
          %s154 = smul.addr %s16, 2
          %s155 = smul.addr %s154, 64
          %s156 = scalar_lea.hbm %s0, %s155
          %s158 = sshll.u32 %s150, 4
          %s159 = int_to_ptr.vmem [resolvable:$true] %s158
          %161 = dma.hbm_to_vmem [thread:$0]  %s156, 128, %s159, %s147
        $region28: #{tpu_custom_call.1} parent=23 // pred_fallthru
          _
      $region24: #{tpu_custom_call.1} parent=5 // pred_fallthru
        _
      %p162 = scmp.le.s32.totalorder 1, %s16
      %p163 = scmp.lt.s32.totalorder %s16, 3
      %p164 = pnand %p162, %p163
      %p165 = pneg %p164
      // Predicated region
      $region29: #{tpu_custom_call.1} parent=5 // pred_check
        _
      $region30: #{tpu_custom_call.1} parent=5 // pred_check_branch
        %167 = sbr.rel (%p164) target = $region32
      $region31: #{tpu_custom_call.1} parent=5 // pred_region
        %s168 = ssub.s32 %s16, 1
        %s169 = sand.u32 %s29, 1
        %s170 = scalar_lea.sflag [#allocation3], %s169
        %s171 = sand.u32 %s29, 1
        %s172 = smul.addr %s171, 8
        %s173 = scalar_lea.vmem [#allocation2], %s172
        // Predicated region
        $region33: #{tpu_custom_call.1} parent=31 // pred_check
          %p174 = pneg %p42
        $region34: #{tpu_custom_call.1} parent=31 // pred_check_branch
          %176 = sbr.rel (%p174) target = $region36
        $region35: #{tpu_custom_call.1} parent=31 // pred_region
          %177 = dma.done %s170, 128
        $region36: #{tpu_custom_call.1} parent=31 // pred_fallthru
          _
        // Predicated region
        $region37: #{tpu_custom_call.1} parent=31 // pred_check
          %p178 = pneg %p63
        $region38: #{tpu_custom_call.1} parent=31 // pred_check_branch
          %180 = sbr.rel (%p178) target = $region40
        $region39: #{tpu_custom_call.1} parent=31 // pred_region
          %181 = dma.done [#allocation6], 64
        $region40: #{tpu_custom_call.1} parent=31 // pred_fallthru
          _
        %s182 = sand.u32 %s29, 1
        %s183 = scalar_lea.sflag [#allocation3], %s182
        %s184 = sand.u32 %s29, 1
        %s185 = smul.addr %s184, 8
        %s186 = scalar_lea.vmem [#allocation2], %s185
        %p187 = pneg %p42
        %p188 = pneg %p39
        %p189 = pneg %p63
        %p190 = pneg %p60
        %p191 = pneg %p84
        %p192 = pneg %p81
        %p193 = pneg %p110
        %p194 = pneg %p107
        %s195 = sand.u32 %s97, 1
        %s196 = scalar_lea.sflag [#allocation4], %s195
        %s197 = sand.u32 %s97, 1
        %s198 = smul.addr %s197, 8
        %s199 = scalar_lea.vmem [#allocation7], %s198
        %v200 = vld [vmem:[%s173] sm:$0xff]
        %v202 = vcombine.high %v200, %v200
        %vm204 = vcmask 1043456
        %v205 = vsel %vm204, %v200, 0.0
        %v206 = vsel %vm204, %v202, 0.0
        %v207 = vadd.f32 %v205, %v206
        %208 = vadd.xlane.f32.xlu0 %v207
        %v209 = vpop.xlane.xlu0 %208
        %v210 = vmul.f32 %v209, 0.00390625
        %v211 = vld [vmem:[#allocation5] sm:$0xf]
        %v212 = vld [vmem:[%s2] sm:$0x1]
        %v213 = vmul.f32 %v210, %v211
        %vm214 = vcmask 27648
        %v215 = vsel %vm214, %v213, 0.0
        %v216 = vrot.slane %v215, 4
        %v217 = vadd.f32 %v215, %v216
        %v218 = vrot.slane %v217, 2
        %v219 = vadd.f32 %v217, %v218
        %v220 = vrot.slane %v219, 1
        %v221 = vadd.f32 %v219, %v220
        %v222 = vadd.f32 %v221, %v212
        %v223 = vmax.f32 %v222, 0.0
        %v224 = vxor.u32 %v223, 2147483648
        %v225 = vmul.f32 %v224, 1.442695
        %v226 = vpow.pop %v225
        %v227 = vadd.f32 %v226, 1.0
        %v228 = vrcp.pop %v227
        %v229 = vmul.f32 1.0, %v228
        %v230 = vlaneseq
        %v231 = vshrl.u32 %v230, 7
        %v232 = vsub.s32 0, %v231
        %v233 = vrot.slane %v229, %v232
        %235 = vbcast.lane.b32.xlu0 %v233, 256
        %v236 = vpop.permute.xlu0 %235
        %v239 = vunpack.c.l.s4 839922192
        %v240 = vunpack.c.0.s8 %v239
        %v241 = vlaneseq
        %v242 = vshrl.u32 %v241, 7
        %v243 = vsub.s32 %v240, %v242
        %v244 = vrot.slane %v236, %v243
        %v246 = vmul.f32 %v200, %v244
        %247 = vst [vmem:[%s199] sm:$0xff] %v246
        %s248 = sand.u32 %s97, 1
        %s249 = scalar_lea.sflag [#allocation4], %s248
        %s250 = sand.u32 %s97, 1
        %s251 = smul.addr %s250, 8
        %s252 = scalar_lea.vmem [#allocation7], %s251
        // Predicated region
        $region41: #{tpu_custom_call.1} parent=31 // pred_check
          %p253 = pneg %p107
        $region42: #{tpu_custom_call.1} parent=31 // pred_check_branch
          %255 = sbr.rel (%p253) target = $region44
        $region43: #{tpu_custom_call.1} parent=31 // pred_region
          %s257 = ssub.s32 128, 128
          %258 = vsyncadd %s249, %s257
          %s259 = smul.addr %s21, 2
          %s260 = smul.addr %s259, 64
          %s261 = scalar_lea.hbm %s3, %s260
          %s263 = sshll.u32 %s252, 4
          %s264 = int_to_ptr.vmem [resolvable:$true] %s263
          %266 = dma.vmem_to_hbm [thread:$0]  %s264, 128, %s261, %s249
        $region44: #{tpu_custom_call.1} parent=31 // pred_fallthru
          _
      $region32: #{tpu_custom_call.1} parent=5 // pred_fallthru
        _
      %p267 = scmp.le.s32.totalorder 2, %s16
      // Predicated region
      $region45: #{tpu_custom_call.1} parent=5 // pred_check
        %p268 = pneg %p267
      $region46: #{tpu_custom_call.1} parent=5 // pred_check_branch
        %270 = sbr.rel (%p268) target = $region48
      $region47: #{tpu_custom_call.1} parent=5 // pred_region
        %s271 = ssub.s32 %s16, 2
        // Predicated region
        $region49: #{tpu_custom_call.1} parent=47 // pred_check
          %p272 = pneg %p113
        $region50: #{tpu_custom_call.1} parent=47 // pred_check_branch
          %274 = sbr.rel (%p272) target = $region52
        $region51: #{tpu_custom_call.1} parent=47 // pred_region
          %s275 = sand.u32 %s98, 1
          %s276 = scalar_lea.sflag [#allocation4], %s275
          %s277 = sand.u32 %s98, 1
          %s278 = smul.addr %s277, 8
          %s279 = scalar_lea.vmem [#allocation7], %s278
          %280 = dma.done %s276, 128
        $region52: #{tpu_custom_call.1} parent=47 // pred_fallthru
          _
      $region48: #{tpu_custom_call.1} parent=5 // pred_fallthru
        _
    $region6: #{tpu_custom_call.1} parent=1 // loop_footer
      %s20 = sadd.s32 1, %s16
    $region7: #{tpu_custom_call.1} parent=1 // loop_footer_branch
      %15 = sbr.rel target = $region3
    $region8: #{tpu_custom_call.1} parent=1 // loop_exit
      _
    %281 = vsyncpa [#allocation3], 1
    %s282 = scalar_lea.sflag [#allocation3], 1
    %283 = vsyncpa %s282, 1
    %284 = vsyncpa [#allocation6], 1
    %285 = vsyncpa [#allocation4], 1
    %s286 = scalar_lea.sflag [#allocation4], 1
    %287 = vsyncpa %s286, 1

</llo_original>
